<compile_context>
chip_gen: v7x
topology: tpu7x:2x2x1
jax: 0.10.0
libtpu: 0.0.40
codegen_flags: <defaults>
</compile_context>

<pallas_src>
import functools

import jax
import jax.numpy as jnp
from jax.experimental import pallas as pl
from jax.experimental.pallas import tpu as pltpu


def _round_up(x, m):
    return ((x + m - 1) // m) * m


# ---------------------------------------------------------------------------
# Fast path: VMEM-resident table, one-hot MXU gather.
# ---------------------------------------------------------------------------

# Thresholds: one-hot flops scale with V, and the resident table is
# double-buffered by the pipeline, so keep it well under the v7x scoped-VMEM
# default (32 MiB) -> <= 8 MiB table (16 MiB with double buffering).
_ONEHOT_MAX_VOCAB = 4096
_ONEHOT_MAX_TABLE_BYTES = 8 * 1024 * 1024


def _embed_onehot_kernel(ids_ref, table_ref, out_ref):
    # ids_ref   : (tt, 1) int32 in VMEM
    # table_ref : (V, E)  VMEM-resident table (same block every step)
    # out_ref   : (tt, E) output tile
    tt = out_ref.shape[0]
    v = table_ref.shape[0]
    ids = ids_ref[...]  # (tt, 1)
    iota = jax.lax.broadcasted_iota(jnp.int32, (tt, v), 1)
    onehot = (iota == ids).astype(table_ref.dtype)  # (tt, V)
    out_ref[...] = jnp.dot(
        onehot, table_ref[...], preferred_element_type=jnp.float32
    ).astype(out_ref.dtype)


def _embed_small_table(ids, table, n_tokens, token_tile):
    V, E = table.shape
    itemsize = jnp.dtype(table.dtype).itemsize

    tt = min(_round_up(token_tile, 8), _round_up(n_tokens, 8))
    n_pad = _round_up(n_tokens, tt)
    ids_pad = jnp.pad(ids, (0, n_pad - n_tokens)).reshape(n_pad, 1)

    out = pl.pallas_call(
        _embed_onehot_kernel,
        out_shape=jax.ShapeDtypeStruct((n_pad, E), table.dtype),
        grid_spec=pltpu.PrefetchScalarGridSpec(
            num_scalar_prefetch=0,
            grid=(n_pad // tt,),
            in_specs=[
                pl.BlockSpec((tt, 1), lambda i: (i, 0)),
                pl.BlockSpec((V, E), lambda i: (0, 0)),  # resident table
            ],
            out_specs=pl.BlockSpec((tt, E), lambda i: (i, 0)),
        ),
        compiler_params=pltpu.CompilerParams(
            dimension_semantics=("parallel",),
        ),
        cost_estimate=pl.CostEstimate(
            flops=int(2 * n_pad * V * E),
            transcendentals=0,
            bytes_accessed=int(V * E * itemsize + n_pad * E * itemsize + n_pad * 4),
        ),
    )(ids_pad, table)
    return out[:n_tokens]


# ---------------------------------------------------------------------------
# Large-table path: HBM table, rolling-window DMA row gather.
# ---------------------------------------------------------------------------

# 1-D SMEM buffers pad to next_pow2(4N) bytes; chunk the token axis across
# pallas_calls so the scalar-prefetched id array always fits SMEM.
_MAX_PREFETCH_IDS = 64 * 1024


def _embed_dma_kernel(ids_ref, table_hbm, out_ref, sems, *, n_tokens, window):
    # ids_ref   : (n_pad,) int32 in SMEM (scalar prefetch)
    # table_hbm : (V, E) ref left in HBM (memory_space=pl.ANY)
    # out_ref   : (tt, E) output block in VMEM (DMA destination)
    # sems      : (window,) DMA semaphores
    step = pl.program_id(0)
    tt = out_ref.shape[0]
    base = step * tt
    # Skip the padded tail: only gather the valid tokens of this step.
    n_valid = jnp.minimum(tt, n_tokens - base)

    def _start(t):
        row = ids_ref[base + t]
        pltpu.make_async_copy(
            table_hbm.at[pl.ds(row, 1), :],
            out_ref.at[pl.ds(t, 1), :],
            sems.at[t % window],
        ).start()

    def _wait(t):
        # Reconstruct a copy of identical shape; wait only consumes the semaphore.
        pltpu.make_async_copy(
            table_hbm.at[pl.ds(0, 1), :],
            out_ref.at[pl.ds(t, 1), :],
            sems.at[t % window],
        ).wait()

    # Rolling window: wait for copy t-W right before reusing its semaphore slot,
    # so up to `window` gathers are always in flight.
    def _issue_body(t, carry):
        @pl.when(t >= window)
        def _():
            _wait(t - window)

        _start(t)
        return carry

    jax.lax.fori_loop(0, n_valid, _issue_body, 0)

    def _drain_body(t, carry):
        _wait(t)
        return carry

    jax.lax.fori_loop(jnp.maximum(n_valid - window, 0), n_valid, _drain_body, 0)


def _embed_dma_gather(ids, table, n_tokens, token_tile, window):
    V, E = table.shape
    itemsize = jnp.dtype(table.dtype).itemsize

    if n_tokens > _MAX_PREFETCH_IDS:
        chunks = []
        for start in range(0, n_tokens, _MAX_PREFETCH_IDS):
            n = min(_MAX_PREFETCH_IDS, n_tokens - start)
            chunks.append(
                _embed_dma_gather(ids[start:start + n], table, n, token_tile, window)
            )
        return jnp.concatenate(chunks, axis=0)

    tt = min(_round_up(token_tile, 8), _round_up(n_tokens, 8))
    n_pad = _round_up(n_tokens, tt)
    ids_pad = jnp.pad(ids, (0, n_pad - n_tokens))
    W = max(1, min(window, tt))

    # TODO(synk): for E < 128 a lane-dense packed output (multiple rows per
    # 128-lane output row) would avoid masked partial stores; typical embedding
    # dims on this path are >= 128 so it is not done here.
    kernel = functools.partial(_embed_dma_kernel, n_tokens=n_tokens, window=W)

    out = pl.pallas_call(
        kernel,
        out_shape=jax.ShapeDtypeStruct((n_pad, E), table.dtype),
        grid_spec=pltpu.PrefetchScalarGridSpec(
            num_scalar_prefetch=1,                         # ids -> SMEM
            grid=(n_pad // tt,),
            in_specs=[pl.BlockSpec(memory_space=pl.ANY)],  # table stays in HBM
            out_specs=pl.BlockSpec((tt, E), lambda i, ids: (i, 0)),
            scratch_shapes=[pltpu.SemaphoreType.DMA((W,))],
        ),
        compiler_params=pltpu.CompilerParams(
            dimension_semantics=("parallel",),             # shard tokens across TCs (v7x)
        ),
        cost_estimate=pl.CostEstimate(
            flops=0,
            transcendentals=0,
            bytes_accessed=int((n_tokens + n_pad) * E * itemsize + n_tokens * 4),
        ),
    )(ids_pad, table)
    return out[:n_tokens]


# ---------------------------------------------------------------------------
# Public wrapper == Embedder.forward(seq) == self.embeddings(seq)
# ---------------------------------------------------------------------------


def embedder_forward(seq, table, *, token_tile=256, dma_window=16,
                     force_dma_gather=False):
    """Pallas equivalent of nn.Embedding(num_embeddings=V, embedding_dim=E)(seq)."""
    B, S = seq.shape
    V, E = table.shape
    N = B * S
    itemsize = jnp.dtype(table.dtype).itemsize
    table_bytes = V * E * itemsize

    ids = seq.reshape(N).astype(jnp.int32)
    # TODO(synk): nn.Embedding raises on out-of-range ids; here they are clamped
    # to avoid a fatal out-of-bounds DMA / gather on malformed input.
    ids = jnp.clip(ids, 0, V - 1)

    use_onehot = (
        not force_dma_gather
        and V <= _ONEHOT_MAX_VOCAB
        and table_bytes <= _ONEHOT_MAX_TABLE_BYTES
    )

    if use_onehot:
        out = _embed_small_table(ids, table, N, token_tile)
    else:
        out = _embed_dma_gather(ids, table, N, token_tile, dma_window)

    return out.reshape(B, S, E)


if __name__ == "__main__":
    # Deterministic synthetic parameters (nn.Embedding initializes weights ~ N(0, 1)).
    VOCAB = 64          # len(vocab)
    EMB_DIM = 32        # config.embedding_dim
    B, S = 2, 8

    key = jax.random.PRNGKey(0)
    k_w, k_s = jax.random.split(key)
    table = jax.random.normal(k_w, (VOCAB, EMB_DIM), dtype=jnp.float32)
    seq = jax.random.randint(k_s, (B, S), 0, VOCAB, dtype=jnp.int32)

    # Fast (VMEM-resident one-hot) path — what the demo sizes select.
    out = embedder_forward(seq, table)
    out = jax.block_until_ready(out)
    ref = jnp.take(table, seq, axis=0)
    assert out.shape == (B, S, EMB_DIM)
    assert jnp.allclose(out, ref), "fast-path embedding lookup mismatch"

    # Also exercise the large-table DMA row-gather path (forced) at small size.
    k_w2, k_s2 = jax.random.split(k_s)
    V2, E2 = 64, 128
    B2, S2 = 2, 72
    table2 = jax.random.normal(k_w2, (V2, E2), dtype=jnp.float32)
    seq2 = jax.random.randint(k_s2, (B2, S2), 0, V2, dtype=jnp.int32)
    out2 = embedder_forward(seq2, table2, force_dma_gather=True,
                            token_tile=128, dma_window=16)
    out2 = jax.block_until_ready(out2)
    ref2 = jnp.take(table2, seq2, axis=0)
    assert out2.shape == (B2, S2, E2)
    assert jnp.allclose(out2, ref2), "dma-gather embedding lookup mismatch"

    print("KERNEL_OK")
</pallas_src>

<mosaic_0001>
module attributes {stable_mosaic.version = 11 : i64} {
  func.func @_embed_onehot_kernel(%arg0: i32, %arg1: memref<16x1xi32, #tpu.memory_space<vmem>>, %arg2: memref<64x32xf32, #tpu.memory_space<vmem>>, %arg3: memref<16x32xf32, #tpu.memory_space<vmem>>) attributes {dimension_semantics = [#tpu.dimension_semantics<parallel>], iteration_bounds = array<i64: 1>, scalar_prefetch = 0 : i64, scratch_operands = 0 : i64, tpu.core_type = #tpu.core_type<tc>, window_params = [{transform_indices = @transform_0, window_bounds = array<i64: 16, 1>}, {pipeline_mode = #tpu.pipeline_mode<synchronous>, transform_indices = @transform_1, window_bounds = array<i64: 64, 32>}, {transform_indices = @transform_2, window_bounds = array<i64: 16, 32>}]} {
    %c0 = arith.constant 0 : index
    %c0_0 = arith.constant 0 : index
    %0 = vector.load %arg1[%c0, %c0_0] : memref<16x1xi32, #tpu.memory_space<vmem>>, vector<16x1xi32>
    %1 = tpu.iota {dimensions = array<i32: 1>} : vector<16x64xi32>
    %2 = vector.broadcast %0 : vector<16x1xi32> to vector<16x64xi32>
    %3 = arith.cmpi eq, %1, %2 : vector<16x64xi32>
    %4 = arith.extui %3 : vector<16x64xi1> to vector<16x64xi32>
    %5 = arith.sitofp %4 : vector<16x64xi32> to vector<16x64xf32>
    %c0_1 = arith.constant 0 : index
    %c0_2 = arith.constant 0 : index
    %6 = vector.load %arg2[%c0_1, %c0_2] : memref<64x32xf32, #tpu.memory_space<vmem>>, vector<64x32xf32>
    %cst = arith.constant dense<0.000000e+00> : vector<16x32xf32>
    %7 = tpu.matmul %5, %6, %cst {dimension_numbers = #tpu.dot_dimension_numbers<[1], [0], [0], [1], [0, 0, 1, 1], [], []>} : vector<16x64xf32>, vector<64x32xf32>, vector<16x32xf32> -> vector<16x32xf32>
    %c0_3 = arith.constant 0 : index
    %c0_4 = arith.constant 0 : index
    %8 = vector.load %arg3[%c0_3, %c0_4] : memref<16x32xf32, #tpu.memory_space<vmem>>, vector<16x32xf32>
    tpu.vector_store %arg3[%c0_3, %c0_4], %7 {strides = array<i32>} : memref<16x32xf32, #tpu.memory_space<vmem>>, vector<16x32xf32>,
    return
  }
  func.func @transform_0(%arg0: i32) -> (i32, i32) {
    %c0_i32 = arith.constant 0 : i32
    %c0_i32_0 = arith.constant 0 : i32
    return %arg0, %c0_i32 : i32, i32
  }
  func.func @transform_1(%arg0: i32) -> (i32, i32) {
    %c0_i32 = arith.constant 0 : i32
    %c0_i32_0 = arith.constant 0 : i32
    %c0_i32_1 = arith.constant 0 : i32
    return %c0_i32, %c0_i32_0 : i32, i32
  }
  func.func @transform_2(%arg0: i32) -> (i32, i32) {
    %c0_i32 = arith.constant 0 : i32
    %c0_i32_0 = arith.constant 0 : i32
    return %arg0, %c0_i32 : i32, i32
  }
}

</mosaic_0001>

<llo_original>
// kernel: tpu_custom_call.1
$region0: #{tpu_custom_call.1}
  #allocation0 [shape = 'u32[]', space=smem, size = 0x4, offset = 0x4, fixed_abs, tag = 'smem constant byte address 0x4 - core index']
  #allocation1 [shape = 'u32[144,128]{1,0:T(1,128)}', space=vmem, size = 0x12000, scoped, tag = 'internal scratch']
  %s0 = inlined_call_operand.vmem [shape: s32[16,1], index: 0, kind: input, shape index: {}]
  %s1 = inlined_call_operand.vmem [shape: f32[64,32], index: 1, kind: input, shape index: {}]
  %s2 = inlined_call_operand.hbm [shape: f32[16,32], index: 2, kind: output, shape index: {}]
  %s3 = sld [smem:[#allocation0]]
  $region18: #{tpu_custom_call.1} parent=0
    _
  %s5 = ssub.s32 1, %s3
  %s6 = scalar_select 0, %s5, %s3
  $region1: #{tpu_custom_call.1} parent=0
    #allocation2 [shape = 'u8[8192]{0}', space=vmem, size = 0x2000, scoped, tag = 'output window, operand 0, single buffered']
    #allocation3 [shape = 's32[1]{0}', space=sflag, size = 0x4, scoped, tag = 'scoped memory for tpu_custom_call.1']
    %7 = vsyncpa [#allocation3], 0
    // Predicated region
    $region2: #{tpu_custom_call.1} parent=1 // pred_check
      _
    $region3: #{tpu_custom_call.1} parent=1 // pred_check_branch
      %9 = sbr.rel (0) target = $region5
    $region4: #{tpu_custom_call.1} parent=1 // pred_region
      _
    $region5: #{tpu_custom_call.1} parent=1 // pred_fallthru
      _
    // Predicated region
    $region6: #{tpu_custom_call.1} parent=1 // pred_check
      _
    $region7: #{tpu_custom_call.1} parent=1 // pred_check_branch
      %11 = sbr.rel (0) target = $region9
    $region8: #{tpu_custom_call.1} parent=1 // pred_region
      _
    $region9: #{tpu_custom_call.1} parent=1 // pred_fallthru
      _
    %v12 = vld [vmem:[%s0] sm:$0xff]
    %v13 = vld [vmem:[%s0 + $0x8] sm:$0xff]
    %v14 = vlaneseq
    %v15 = vand.u32 %v14, 127
    %16 = vset.pattern.permute.xlu0 0
    %17 = vperm.xlu0 %16, %v12
    %v18 = vpop.permute.xlu0 %17
    %19 = vset.pattern.permute.xlu0 0
    %20 = vperm.xlu0 %19, %v13
    %v21 = vpop.permute.xlu0 %20
    %vm22 = vcmp.eq.s32.totalorder %v15, %v18
    %vm23 = vcmp.eq.s32.totalorder %v15, %v21
    %v24 = vsel %vm22, 1, 0
    %v25 = vsel %vm23, 1, 0
    %v26 = vcvt.s32.f32 %v24
    %v27 = vcvt.s32.f32 %v25
    %v28 = vld [vmem:[%s1] sm:$0xff]
    %v29 = vld [vmem:[%s1 + $0x8] sm:$0xff]
    %v30 = vld [vmem:[%s1 + $0x10] sm:$0xff]
    %v31 = vld [vmem:[%s1 + $0x18] sm:$0xff]
    %v32 = vld [vmem:[%s1 + $0x20] sm:$0xff]
    %v33 = vld [vmem:[%s1 + $0x28] sm:$0xff]
    %v34 = vld [vmem:[%s1 + $0x30] sm:$0xff]
    %v35 = vld [vmem:[%s1 + $0x38] sm:$0xff]
    %vm36 = vcmask 523264
    %v38 = vsel %vm36, %v26, 0
    %v41 = vsel %vm36, %v27, 0
    %43 = vmatprep.subr.mxu0 0.0
    %44 = vmatpush1.msra.mxu0 %v28
    %45 = vmatprep.subr.mxu0 0.0
    %46 = vmatpush1.msra.mxu0 %v29
    %47 = vmatprep.subr.mxu0 0.0
    %48 = vmatpush1.msra.mxu0 %v30
    %49 = vmatprep.subr.mxu0 0.0
    %50 = vmatpush1.msra.mxu0 %v31
    %51 = vmatprep.subr.mxu0 0.0
    %52 = vmatpush1.msra.mxu0 %v32
    %53 = vmatprep.subr.mxu0 0.0
    %54 = vmatpush1.msra.mxu0 %v33
    %55 = vmatprep.subr.mxu0 0.0
    %56 = vmatpush1.msra.mxu0 %v34
    %57 = vmatprep.subr.mxu0 0.0
    %58 = vmatpush1.msra.mxu0 %v35
    %59 = vmatprep.subr.mxu0 0.0
    %60 = vmatpush1.msra.mxu0 0.0
    %61 = vmatprep.subr.mxu0 0.0
    %62 = vmatpush1.msra.mxu0 0.0
    %63 = vmatprep.subr.mxu0 0.0
    %64 = vmatpush1.msra.mxu0 0.0
    %65 = vmatprep.subr.mxu0 0.0
    %66 = vmatpush1.msra.mxu0 0.0
    %67 = vmatprep.subr.mxu0 0.0
    %68 = vmatpush1.msra.mxu0 0.0
    %69 = vmatprep.subr.mxu0 0.0
    %70 = vmatpush1.msra.mxu0 0.0
    %71 = vmatprep.subr.mxu0 0.0
    %72 = vmatpush1.msra.mxu0 0.0
    %73 = vmatprep.subr.mxu0 0.0
    %74 = vmatpush1.msra.mxu0 0.0
    %75 = vmatprep.subr.mxu0 0.0
    %76 = vmatpush1.msra.mxu0 0.0
    %77 = vmatprep.subr.mxu0 0.0
    %78 = vmatpush1.msra.mxu0 0.0
    %79 = vmatprep.subr.mxu0 0.0
    %80 = vmatpush1.msra.mxu0 0.0
    %81 = vmatprep.subr.mxu0 0.0
    %82 = vmatpush1.msra.mxu0 0.0
    %83 = vmatprep.subr.mxu0 0.0
    %84 = vmatpush1.msra.mxu0 0.0
    %85 = vmatprep.subr.mxu0 0.0
    %86 = vmatpush1.msra.mxu0 0.0
    %87 = vmatprep.subr.mxu0 0.0
    %88 = vmatpush1.msra.mxu0 0.0
    %89 = vmatprep.subr.mxu0 0.0
    %90 = vmatpush1.msra.mxu0 0.0
    %91 = vmatprep.subr.mxu0 0.0
    %92 = vmatpush1.msra.mxu0 0.0
    %93 = vmatprep.subr.mxu0 0.0
    %94 = vmatpush1.msra.mxu0 0.0
    %95 = vmatprep.subr.mxu0 0.0
    %96 = vmatpush1.msra.mxu0 0.0
    %97 = vmatprep.subr.mxu0 0.0
    %98 = vmatpush1.msra.mxu0 0.0
    %99 = vmatprep.subr.mxu0 0.0
    %100 = vmatpush1.msra.mxu0 0.0
    %101 = vmatprep.subr.mxu0 0.0
    %102 = vmatpush1.msra.mxu0 0.0
    %103 = vmatprep.subr.mxu0 0.0
    %104 = vmatpush1.msra.mxu0 0.0
    %105 = vmatprep.subr.mxu0 0.0
    %106 = vmatpush1.msra.mxu0 0.0
    %107 = vmatprep.mubr.f32.mxu0 0.0
    %108 = vmatmul.mubr.f32.gmra.mrb[0].mxu0 %v38
    %v109 = vpop.f32.mrb[0].mxu0
    %v110 = vadd.f32 0.0, %v109
    %v111 = vpop.f32.mrb[0].mxu0
    %112 = vmatprep.mubr.f32.mxu0 0.0
    %113 = vmatmul.mubr.f32.gmra.mrb[0].mxu0 %v41
    %v114 = vpop.f32.mrb[0].mxu0
    %v115 = vadd.f32 0.0, %v114
    %v116 = vpop.f32.mrb[0].mxu0
    %117 = vdwg.mxu0
    %vm118 = vcmask 261120
    %119 = vst.msk [vmem:[#allocation2] sm:$0xff] %vm118, %v110
    %120 = vst.msk [vmem:[#allocation2 + $0x8] sm:$0xff] %vm118, %v115
    // Predicated region
    $region10: #{tpu_custom_call.1} parent=1 // pred_check
      _
    $region11: #{tpu_custom_call.1} parent=1 // pred_check_branch
      %122 = sbr.rel (0) target = $region13
    $region12: #{tpu_custom_call.1} parent=1 // pred_region
      %s124 = ssub.s32 256, 256
      %125 = vsyncadd [#allocation3], %s124
      %s126 = sshll.u32 [#allocation2], 4
      %s127 = int_to_ptr.vmem [resolvable:$true] %s126
      %132 = dma.vmem_to_hbm [thread:$0]  %s127, 256, %s2, [#allocation3], 128, 128, 8
    $region13: #{tpu_custom_call.1} parent=1 // pred_fallthru
      _
    // Predicated region
    $region14: #{tpu_custom_call.1} parent=1 // pred_check
      _
    $region15: #{tpu_custom_call.1} parent=1 // pred_check_branch
      %134 = sbr.rel (0) target = $region17
    $region16: #{tpu_custom_call.1} parent=1 // pred_region
      %135 = dma.done [#allocation3], 256
    $region17: #{tpu_custom_call.1} parent=1 // pred_fallthru
      _
    %136 = vsyncpa [#allocation3], 1

</llo_original>
